<compile_context>
chip_gen: v6e
topology: v6e:2x2x1
jax: 0.10.0
libtpu: 0.0.40
codegen_flags: <defaults>
</compile_context>

<pallas_src>
import functools

import numpy as np
import jax
import jax.numpy as jnp
from jax import lax
from jax.experimental import pallas as pl
from jax.experimental.pallas import tpu as pltpu

# ---- Module hyperparameters (small, consistent with ModelEmbeddings.__init__) ----
EMBED_SIZE = 32        # embed_size (char-embed dim == output word-embed dim in this module)
VOCAB_SIZE = 30        # len(vocab.char2id)
KERNEL_K = 5           # CNN kernel size (standard a5 CNN)
MAX_WORD_LEN = 12      # max_word_length
SENT_LEN = 8           # sentence_length
BATCH = 2              # batch_size
DROPOUT_P = 0.3        # nn.Dropout(0.3) -- eval-mode forward => identity (see TODO below)
VOCAB_PAD = 32         # vocab stride padded to a power of two (lane-friendly one-hot layout)


# --------------------------------------------------------------------------------------------
# Kernel
# --------------------------------------------------------------------------------------------
def _fused_kernel(idx_ref, r_ref, wbh_ref, wbl_ref, bc_ref, wpg_ref, bpg_ref, o_ref,
                  *, w_out, e_out, vp):
    """Fused embedding-gather + (spec-faithful) reshape + Conv1d + ReLU + MaxPool + Highway.

    idx_ref : (tn, W)          int32 char ids per word position
    r_ref   : (W, W*Vp)        bf16 constant expansion  R[r, q] = [q // Vp == r]
    wbh/wbl : (W*Vp, w_out*E)  bf16 hi/lo split of the fused embedding+conv weight (hi+lo ~= f32)
    bc_ref  : (1, E) f32 conv bias ; wpg_ref: (E, 2E) f32 [proj|gate] W ; bpg_ref: (1, 2E) f32 b
    o_ref   : (tn, E) f32
    """
    # One-hot selector A[n, q] = [idx[n, q // Vp] == q % Vp], built without any gather:
    #   idx_exp[n, q] = idx[n, q // Vp]  via a tiny bf16 0/1 matmul (values <= 31 -> exact)
    #   q_mod[n, q]   = q % Vp           via an iota + bitwise AND (Vp is a power of two)
    idx_exp = jnp.dot(idx_ref[...].astype(jnp.bfloat16), r_ref[...],
                      preferred_element_type=jnp.float32)                       # (tn, W*Vp)
    q_iota = lax.broadcasted_iota(jnp.int32, idx_exp.shape, 1)
    q_mod = (q_iota & (vp - 1)).astype(jnp.float32)
    a = jnp.where(idx_exp == q_mod, 1.0, 0.0).astype(jnp.bfloat16)              # exact 0/1

    # Embedding lookup + faithful `.reshape(-1, E, W)` relayout + Conv1d over ALL time steps:
    # two bf16 MXU passes (hi + lo), accumulated in f32.
    conv_all = (jnp.dot(a, wbh_ref[...], preferred_element_type=jnp.float32) +
                jnp.dot(a, wbl_ref[...], preferred_element_type=jnp.float32))   # (tn, w_out*E)

    # Max over time.  Lanes are packed as [t*E + o]; when w_out is a power of two a log-depth
    # circular-roll reduction (XLU slot, free vs VALU) leaves every lane with the max of its
    # (mod E) residue class; otherwise fall back to the static pairwise slice loop.
    total = w_out * e_out
    if w_out & (w_out - 1) == 0:
        m = conv_all
        s = total // 2
        while s >= e_out:
            m = jnp.maximum(m, pltpu.roll(m, s, axis=1))
            s //= 2
        m = m[:, :e_out]
    else:
        m = conv_all[:, 0:e_out]
        for t in range(1, w_out):
            m = jnp.maximum(m, conv_all[:, t * e_out:(t + 1) * e_out])
    # Conv bias + ReLU hoisted out of the max (exact: bias is time-invariant, ReLU monotone).
    h = jnp.maximum(m + bc_ref[...], 0.0)                                       # (tn, E)

    # Highway: proj & gate fused into one (tn, E) @ (E, 2E) f32 dot.
    pg = jnp.dot(h, wpg_ref[...], preferred_element_type=jnp.float32) + bpg_ref[...]
    proj = jnp.maximum(pg[:, :e_out], 0.0)
    gate = jax.nn.sigmoid(pg[:, e_out:])
    o_ref[...] = (h + gate * (proj - h)).astype(o_ref.dtype)
    # TODO(synk): when N grows large, emit a lane-dense (tn//4, 4*E)=128-lane out block (undone by a
    # wrapper reshape) so stores are unmasked; irrelevant at the current 2 KiB output.


# --------------------------------------------------------------------------------------------
# One-time (init-time) weight preparation -- NOT in the per-call path
# --------------------------------------------------------------------------------------------
def _build_fused_conv_weight(emb, conv_w, *, w, k, e, vp):
    """WB[r*Vp + v, t*E + o] = sum_s emb[v, s] * conv_w[o, c, j]
       with c = (r*E + s - t) // W, j = (r*E + s - t) % W,
       valid iff r*E + s - t >= 0, j < K, c < E.

    Folds the embedding table, the spec's `.reshape(-1, E, W)` relayout and the Conv1d (all w_out
    output positions) into one (W*Vp, w_out*E) matrix.  Data-independent -> computed once."""
    w_out = w - k + 1
    e_out = conv_w.shape[0]
    v = emb.shape[0]
    t_i = np.arange(w_out)[:, None, None]            # (w_out, 1, 1)
    r_i = np.arange(w)[None, :, None]                # (1, W, 1)
    s_i = np.arange(e)[None, None, :]                # (1, 1, E)
    d = r_i * e + s_i - t_i                          # (w_out, W, E)
    c = d // w
    j = d % w
    valid = (d >= 0) & (j < k) & (c < e)
    c_s = np.where(valid, c, 0)
    j_s = np.where(valid, j, 0)
    # WT[o, t, r, s] = conv_w[o, c, j] where it is a valid conv tap, else 0
    wt = conv_w[:, c_s, j_s] * jnp.asarray(valid, conv_w.dtype)        # (E_out, w_out, W, E)
    wb = jnp.einsum("vs,otrs->rvto", emb, wt,
                    precision=lax.Precision.HIGHEST)                   # (W, V, w_out, E_out)
    wb = jnp.pad(wb, ((0, 0), (0, vp - v), (0, 0), (0, 0)))            # pad vocab V -> Vp
    return wb.reshape(w * vp, w_out * e_out).astype(jnp.float32)


def prepare_constants(params):
    """Per-model, data-independent constants.  Call ONCE at init; reuse across forward calls."""
    W, E, K, Vp = MAX_WORD_LEN, EMBED_SIZE, KERNEL_K, VOCAB_PAD
    wb = _build_fused_conv_weight(params["emb"], params["conv_w"], w=W, k=K, e=E, vp=Vp)
    wb_hi = wb.astype(jnp.bfloat16)                                    # bf16 hi/lo split -> 2 MXU
    wb_lo = (wb - wb_hi.astype(jnp.float32)).astype(jnp.bfloat16)      # passes, ~1e-5 rel error
    r_mat = np.repeat(np.eye(W, dtype=np.float32), Vp, axis=1)         # (W, W*Vp), exact 0/1
    consts = {
        "r": jnp.asarray(r_mat, dtype=jnp.bfloat16),
        "wb_hi": wb_hi,
        "wb_lo": wb_lo,
        "bc": params["conv_b"].reshape(1, E).astype(jnp.float32),
        "wpg": jnp.concatenate([params["proj_w"].T, params["gate_w"].T],
                               axis=1).astype(jnp.float32),            # torch (out,in) -> (in,out)
        "bpg": jnp.concatenate([params["proj_b"], params["gate_b"]]
                               ).reshape(1, 2 * E).astype(jnp.float32),
    }
    return jax.device_put(consts)                                      # device-resident once


# --------------------------------------------------------------------------------------------
# Forward wrapper
# --------------------------------------------------------------------------------------------
def _choose_tile(n):
    """Rows per grid step: prefer >=2 'parallel' steps (both v7x TensorCores run), cap at 512 rows
    so large N amortizes the constant-weight DMA while filling the MXU M-dim."""
    for t in (512, 256, 128, 64, 32, 16, 8):
        if n % t == 0 and n // t >= 2:
            return t
    return n


@functools.partial(jax.jit, static_argnames=("tn",))
def model_embeddings_forward(inp, consts, *, tn=None):
    """Forward pass of ModelEmbeddings.

    inp   : (S, B, W) int32 character indices
    consts: output of prepare_constants(params)
    return: (S, B, E) float32 word embeddings
    """
    S, B, W = inp.shape
    E = EMBED_SIZE
    Vp = VOCAB_PAD
    w_out = W - KERNEL_K + 1
    N = S * B
    if tn is None:
        tn = _choose_tile(N)
    assert N % tn == 0 and tn % 8 == 0
    assert Vp & (Vp - 1) == 0

    idx2d = inp.reshape(N, W).astype(jnp.int32)       # faithful torch (-1, ...) leading merge

    kernel = functools.partial(_fused_kernel, w_out=w_out, e_out=E, vp=Vp)
    out = pl.pallas_call(
        kernel,
        out_shape=jax.ShapeDtypeStruct((N, E), jnp.float32),
        grid_spec=pltpu.PrefetchScalarGridSpec(
            num_scalar_prefetch=0,
            grid=(N // tn,),
            in_specs=[
                pl.BlockSpec((tn, W), lambda i: (i, 0)),               # char ids (per step)
                # constant-weight blocks: same block index every step -> DMA'd once, kept resident
                pl.BlockSpec((W, W * Vp), lambda i: (0, 0)),           # one-hot expansion R
                pl.BlockSpec((W * Vp, w_out * E), lambda i: (0, 0)),   # fused emb+conv weight (hi)
                pl.BlockSpec((W * Vp, w_out * E), lambda i: (0, 0)),   # fused emb+conv weight (lo)
                pl.BlockSpec((1, E), lambda i: (0, 0)),                # conv bias
                pl.BlockSpec((E, 2 * E), lambda i: (0, 0)),            # highway [proj|gate] W
                pl.BlockSpec((1, 2 * E), lambda i: (0, 0)),            # highway [proj|gate] b
            ],
            out_specs=pl.BlockSpec((tn, E), lambda i: (i, 0)),
        ),
        compiler_params=pltpu.CompilerParams(dimension_semantics=("parallel",)),
    )(idx2d, consts["r"], consts["wb_hi"], consts["wb_lo"],
      consts["bc"], consts["wpg"], consts["bpg"])

    # nn.Dropout(0.3): eval-mode forward is identity.
    # TODO(synk): training-mode stochastic dropout mask not applied (RNG not reproducible vs torch).
    return out.reshape(S, B, E)


# --------------------------------------------------------------------------------------------
# Plain-JAX reference (mirrors the torch module, including its reshape-not-permute) & test
# --------------------------------------------------------------------------------------------
def reference_forward(inp, params):
    S, B, W = inp.shape
    E = EMBED_SIZE
    x_emb = params["emb"][inp]
    x = x_emb.reshape(S * B, E, W)
    conv = jax.lax.conv_general_dilated(
        x, params["conv_w"], window_strides=(1,), padding="VALID",
        dimension_numbers=("NCH", "OIH", "NCH"))
    conv = conv + params["conv_b"][None, :, None]
    conv = jnp.maximum(conv, 0.0)
    h = jnp.max(conv, axis=-1)
    proj = jnp.maximum(h @ params["proj_w"].T + params["proj_b"], 0.0)
    gate = jax.nn.sigmoid(h @ params["gate_w"].T + params["gate_b"])
    out = gate * proj + (1.0 - gate) * h
    return out.reshape(S, B, E)


def init_params(key):
    E, K, V = EMBED_SIZE, KERNEL_K, VOCAB_SIZE
    ks = jax.random.split(key, 7)
    return {
        "emb":    (jax.random.normal(ks[0], (V, E), jnp.float32) * 0.1),
        "conv_w": (jax.random.normal(ks[1], (E, E, K), jnp.float32) * (1.0 / (E * K) ** 0.5)),
        "conv_b": (jax.random.normal(ks[2], (E,), jnp.float32) * 0.05),
        "proj_w": (jax.random.normal(ks[3], (E, E), jnp.float32) * (1.0 / E ** 0.5)),
        "proj_b": jnp.zeros((E,), jnp.float32),
        "gate_w": (jax.random.normal(ks[4], (E, E), jnp.float32) * (1.0 / E ** 0.5)),
        "gate_b": (jax.random.normal(ks[5], (E,), jnp.float32) * 0.05),
    }


if __name__ == "__main__":
    key = jax.random.PRNGKey(0)
    pkey, ikey = jax.random.split(key)
    params = init_params(pkey)
    consts = prepare_constants(params)          # one-time weight prep (init-time, per perf review)

    inp = jax.random.randint(ikey, (SENT_LEN, BATCH, MAX_WORD_LEN), 0, VOCAB_SIZE,
                             dtype=jnp.int32)

    out = jax.block_until_ready(model_embeddings_forward(inp, consts))
    ref = jax.block_until_ready(reference_forward(inp, params))

    assert out.shape == (SENT_LEN, BATCH, EMBED_SIZE)
    # tight enough to catch indexing/weight-folding bugs; loose enough for bf16 hi/lo + f32 reassoc
    assert jnp.allclose(out, ref, atol=2e-4, rtol=2e-4), "mismatch vs reference"

    print("KERNEL_OK")
</pallas_src>

<mosaic_0001>
module attributes {stable_mosaic.version = 11 : i64} {
  func.func @_fused_kernel(%arg0: i32, %arg1: memref<8x12xi32, #tpu.memory_space<vmem>>, %arg2: memref<12x384xbf16, #tpu.memory_space<vmem>>, %arg3: memref<384x256xbf16, #tpu.memory_space<vmem>>, %arg4: memref<384x256xbf16, #tpu.memory_space<vmem>>, %arg5: memref<1x32xf32, #tpu.memory_space<vmem>>, %arg6: memref<32x64xf32, #tpu.memory_space<vmem>>, %arg7: memref<1x64xf32, #tpu.memory_space<vmem>>, %arg8: memref<8x32xf32, #tpu.memory_space<vmem>>) attributes {dimension_semantics = [#tpu.dimension_semantics<parallel>], iteration_bounds = array<i64: 2>, scalar_prefetch = 0 : i64, scratch_operands = 0 : i64, tpu.core_type = #tpu.core_type<tc>, window_params = [{transform_indices = @transform_0, window_bounds = array<i64: 8, 12>}, {pipeline_mode = #tpu.pipeline_mode<synchronous>, transform_indices = @transform_1, window_bounds = array<i64: 12, 384>}, {pipeline_mode = #tpu.pipeline_mode<synchronous>, transform_indices = @transform_2, window_bounds = array<i64: 384, 256>}, {pipeline_mode = #tpu.pipeline_mode<synchronous>, transform_indices = @transform_3, window_bounds = array<i64: 384, 256>}, {pipeline_mode = #tpu.pipeline_mode<synchronous>, transform_indices = @transform_4, window_bounds = array<i64: 1, 32>}, {pipeline_mode = #tpu.pipeline_mode<synchronous>, transform_indices = @transform_5, window_bounds = array<i64: 32, 64>}, {pipeline_mode = #tpu.pipeline_mode<synchronous>, transform_indices = @transform_6, window_bounds = array<i64: 1, 64>}, {transform_indices = @transform_7, window_bounds = array<i64: 8, 32>}]} {
    %c0 = arith.constant 0 : index
    %c0_0 = arith.constant 0 : index
    %0 = vector.load %arg1[%c0, %c0_0] : memref<8x12xi32, #tpu.memory_space<vmem>>, vector<8x12xi32>
    %1 = arith.sitofp %0 : vector<8x12xi32> to vector<8x12xbf16>
    %c0_1 = arith.constant 0 : index
    %c0_2 = arith.constant 0 : index
    %2 = vector.load %arg2[%c0_1, %c0_2] : memref<12x384xbf16, #tpu.memory_space<vmem>>, vector<12x384xbf16>
    %cst = arith.constant dense<0.000000e+00> : vector<8x384xf32>
    %3 = tpu.matmul %1, %2, %cst {dimension_numbers = #tpu.dot_dimension_numbers<[1], [0], [0], [1], [0, 0, 1, 1], [], []>} : vector<8x12xbf16>, vector<12x384xbf16>, vector<8x384xf32> -> vector<8x384xf32>
    %4 = tpu.iota {dimensions = array<i32: 1>} : vector<8x384xi32>
    %c31_i32 = arith.constant 31 : i32
    %5 = vector.broadcast %c31_i32 : i32 to vector<8x384xi32>
    %6 = arith.andi %4, %5 : vector<8x384xi32>
    %7 = arith.sitofp %6 : vector<8x384xi32> to vector<8x384xf32>
    %8 = arith.cmpf oeq, %3, %7 : vector<8x384xf32>
    %cst_3 = arith.constant 1.000000e+00 : f32
    %cst_4 = arith.constant 0.000000e+00 : f32
    %9 = vector.broadcast %cst_3 : f32 to vector<8x384xf32>
    %10 = vector.broadcast %cst_4 : f32 to vector<8x384xf32>
    %11 = arith.select %8, %9, %10 : vector<8x384xi1>, vector<8x384xf32>
    %12 = arith.truncf %11 : vector<8x384xf32> to vector<8x384xbf16>
    %c0_5 = arith.constant 0 : index
    %c0_6 = arith.constant 0 : index
    %13 = vector.load %arg3[%c0_5, %c0_6] : memref<384x256xbf16, #tpu.memory_space<vmem>>, vector<384x256xbf16>
    %cst_7 = arith.constant dense<0.000000e+00> : vector<8x256xf32>
    %14 = tpu.matmul %12, %13, %cst_7 {dimension_numbers = #tpu.dot_dimension_numbers<[1], [0], [0], [1], [0, 0, 1, 1], [], []>} : vector<8x384xbf16>, vector<384x256xbf16>, vector<8x256xf32> -> vector<8x256xf32>
    %c0_8 = arith.constant 0 : index
    %c0_9 = arith.constant 0 : index
    %15 = vector.load %arg4[%c0_8, %c0_9] : memref<384x256xbf16, #tpu.memory_space<vmem>>, vector<384x256xbf16>
    %cst_10 = arith.constant dense<0.000000e+00> : vector<8x256xf32>
    %16 = tpu.matmul %12, %15, %cst_10 {dimension_numbers = #tpu.dot_dimension_numbers<[1], [0], [0], [1], [0, 0, 1, 1], [], []>} : vector<8x384xbf16>, vector<384x256xbf16>, vector<8x256xf32> -> vector<8x256xf32>
    %17 = arith.addf %14, %16 : vector<8x256xf32>
    %c128_i32 = arith.constant 128 : i32
    %18 = tpu.dynamic_rotate %17 by %c128_i32 dim 1 : vector<8x256xf32>, i32 -> vector<8x256xf32>
    %19 = arith.maximumf %17, %18 : vector<8x256xf32>
    %c64_i32 = arith.constant 64 : i32
    %20 = tpu.dynamic_rotate %19 by %c64_i32 dim 1 : vector<8x256xf32>, i32 -> vector<8x256xf32>
    %21 = arith.maximumf %19, %20 : vector<8x256xf32>
    %c32_i32 = arith.constant 32 : i32
    %22 = tpu.dynamic_rotate %21 by %c32_i32 dim 1 : vector<8x256xf32>, i32 -> vector<8x256xf32>
    %23 = arith.maximumf %21, %22 : vector<8x256xf32>
    %24 = vector.extract_strided_slice %23 {offsets = [0, 0], sizes = [8, 32], strides = [1, 1]} : vector<8x256xf32> to vector<8x32xf32>
    %c0_11 = arith.constant 0 : index
    %c0_12 = arith.constant 0 : index
    %25 = vector.load %arg5[%c0_11, %c0_12] : memref<1x32xf32, #tpu.memory_space<vmem>>, vector<1x32xf32>
    %26 = vector.broadcast %25 : vector<1x32xf32> to vector<8x32xf32>
    %27 = arith.addf %24, %26 : vector<8x32xf32>
    %cst_13 = arith.constant 0.000000e+00 : f32
    %28 = vector.broadcast %cst_13 : f32 to vector<8x32xf32>
    %29 = arith.maximumf %27, %28 : vector<8x32xf32>
    %c0_14 = arith.constant 0 : index
    %c0_15 = arith.constant 0 : index
    %30 = vector.load %arg6[%c0_14, %c0_15] : memref<32x64xf32, #tpu.memory_space<vmem>>, vector<32x64xf32>
    %cst_16 = arith.constant dense<0.000000e+00> : vector<8x64xf32>
    %31 = tpu.matmul %29, %30, %cst_16 {dimension_numbers = #tpu.dot_dimension_numbers<[1], [0], [0], [1], [0, 0, 1, 1], [], []>} : vector<8x32xf32>, vector<32x64xf32>, vector<8x64xf32> -> vector<8x64xf32>
    %c0_17 = arith.constant 0 : index
    %c0_18 = arith.constant 0 : index
    %32 = vector.load %arg7[%c0_17, %c0_18] : memref<1x64xf32, #tpu.memory_space<vmem>>, vector<1x64xf32>
    %33 = vector.broadcast %32 : vector<1x64xf32> to vector<8x64xf32>
    %34 = arith.addf %31, %33 : vector<8x64xf32>
    %35 = vector.extract_strided_slice %34 {offsets = [0, 0], sizes = [8, 32], strides = [1, 1]} : vector<8x64xf32> to vector<8x32xf32>
    %cst_19 = arith.constant 0.000000e+00 : f32
    %36 = vector.broadcast %cst_19 : f32 to vector<8x32xf32>
    %37 = arith.maximumf %35, %36 : vector<8x32xf32>
    %38 = vector.extract_strided_slice %34 {offsets = [0, 32], sizes = [8, 32], strides = [1, 1]} : vector<8x64xf32> to vector<8x32xf32>
    %39 = arith.negf %38 : vector<8x32xf32>
    %40 = math.exp %39 : vector<8x32xf32>
    %cst_20 = arith.constant 1.000000e+00 : f32
    %41 = vector.broadcast %cst_20 : f32 to vector<8x32xf32>
    %42 = arith.addf %41, %40 : vector<8x32xf32>
    %43 = arith.divf %41, %42 : vector<8x32xf32>
    %44 = arith.subf %37, %29 : vector<8x32xf32>
    %45 = arith.mulf %43, %44 : vector<8x32xf32>
    %46 = arith.addf %29, %45 : vector<8x32xf32>
    %c0_21 = arith.constant 0 : index
    %c0_22 = arith.constant 0 : index
    %47 = vector.load %arg8[%c0_21, %c0_22] : memref<8x32xf32, #tpu.memory_space<vmem>>, vector<8x32xf32>
    tpu.vector_store %arg8[%c0_21, %c0_22], %46 {strides = array<i32>} : memref<8x32xf32, #tpu.memory_space<vmem>>, vector<8x32xf32>,
    return
  }
  func.func @transform_0(%arg0: i32) -> (i32, i32) {
    %c0_i32 = arith.constant 0 : i32
    %c0_i32_0 = arith.constant 0 : i32
    return %arg0, %c0_i32 : i32, i32
  }
  func.func @transform_1(%arg0: i32) -> (i32, i32) {
    %c0_i32 = arith.constant 0 : i32
    %c0_i32_0 = arith.constant 0 : i32
    %c0_i32_1 = arith.constant 0 : i32
    return %c0_i32, %c0_i32_0 : i32, i32
  }
  func.func @transform_2(%arg0: i32) -> (i32, i32) {
    %c0_i32 = arith.constant 0 : i32
    %c0_i32_0 = arith.constant 0 : i32
    %c0_i32_1 = arith.constant 0 : i32
    return %c0_i32, %c0_i32_0 : i32, i32
  }
  func.func @transform_3(%arg0: i32) -> (i32, i32) {
    %c0_i32 = arith.constant 0 : i32
    %c0_i32_0 = arith.constant 0 : i32
    %c0_i32_1 = arith.constant 0 : i32
    return %c0_i32, %c0_i32_0 : i32, i32
  }
  func.func @transform_4(%arg0: i32) -> (i32, i32) {
    %c0_i32 = arith.constant 0 : i32
    %c0_i32_0 = arith.constant 0 : i32
    %c0_i32_1 = arith.constant 0 : i32
    return %c0_i32, %c0_i32_0 : i32, i32
  }
  func.func @transform_5(%arg0: i32) -> (i32, i32) {
    %c0_i32 = arith.constant 0 : i32
    %c0_i32_0 = arith.constant 0 : i32
    %c0_i32_1 = arith.constant 0 : i32
    return %c0_i32, %c0_i32_0 : i32, i32
  }
  func.func @transform_6(%arg0: i32) -> (i32, i32) {
    %c0_i32 = arith.constant 0 : i32
    %c0_i32_0 = arith.constant 0 : i32
    %c0_i32_1 = arith.constant 0 : i32
    return %c0_i32, %c0_i32_0 : i32, i32
  }
  func.func @transform_7(%arg0: i32) -> (i32, i32) {
    %c0_i32 = arith.constant 0 : i32
    %c0_i32_0 = arith.constant 0 : i32
    return %arg0, %c0_i32 : i32, i32
  }
}

</mosaic_0001>

<llo_original>
// kernel: model_embeddings_forward.1
$region0: #{model_embeddings_forward.1}
  #allocation0 [shape = 'u32[]', space=smem, size = 0x4, offset = 0x4, fixed_abs, tag = 'smem constant byte address 0x4 - core index']
  #allocation1 [shape = 'u32[144,128]{1,0:T(1,128)}', space=vmem, size = 0x12000, scoped, tag = 'internal scratch']
  %s0 = inlined_call_operand.hbm [shape: s32[16,12], index: 0, kind: input, shape index: {}]
  %s1 = inlined_call_operand.hbm [shape: bf16[12,384], index: 1, kind: input, shape index: {}]
  %s2 = inlined_call_operand.hbm [shape: bf16[384,256], index: 2, kind: input, shape index: {}]
  %s3 = inlined_call_operand.hbm [shape: bf16[384,256], index: 3, kind: input, shape index: {}]
  %s4 = inlined_call_operand.vmem [shape: f32[1,32], index: 4, kind: input, shape index: {}]
  %s5 = inlined_call_operand.hbm [shape: f32[32,64], index: 5, kind: input, shape index: {}]
  %s6 = inlined_call_operand.vmem [shape: f32[1,64], index: 6, kind: input, shape index: {}]
  %s7 = inlined_call_operand.hbm [shape: f32[16,32], index: 7, kind: output, shape index: {}]
  %s8 = sld [smem:[#allocation0]]
  $region81: #{model_embeddings_forward.1} parent=0
    _
  %s10 = ssub.s32 1, %s8
  %s11 = scalar_select 0, %s10, %s8
  $region1: #{model_embeddings_forward.1} parent=0
    #allocation2 [shape = 'u8[8192]{0}', space=vmem, size = 0x2000, scoped, tag = 'input window, operand 0']
    #allocation3 [shape = 's32[2]{0}', space=sflag, size = 0x8, scoped, tag = 'scoped memory for model_embeddings_forward.1']
    #allocation4 [shape = 's32[2]{0}', space=sflag, size = 0x8, scoped, tag = 'scoped memory for model_embeddings_forward.1']
    #allocation5 [shape = 'u8[12288]{0}', space=vmem, size = 0x3000, scoped, tag = 'input window, operand 1, single buffered']
    #allocation6 [shape = 's32[1]{0}', space=sflag, size = 0x4, scoped, tag = 'scoped memory for model_embeddings_forward.1']
    #allocation7 [shape = 'u8[196608]{0}', space=vmem, size = 0x30000, scoped, tag = 'input window, operand 2, single buffered']
    #allocation8 [shape = 'u8[196608]{0}', space=vmem, size = 0x30000, scoped, tag = 'input window, operand 3, single buffered']
    #allocation9 [shape = 's32[1]{0}', space=sflag, size = 0x4, scoped, tag = 'scoped memory for model_embeddings_forward.1']
    #allocation10 [shape = 'u8[16384]{0}', space=vmem, size = 0x4000, scoped, tag = 'input window, operand 5, single buffered']
    #allocation11 [shape = 'u8[8192]{0}', space=vmem, size = 0x2000, scoped, tag = 'output window, operand 0']
    %12 = vsyncpa [#allocation3], 0
    %s13 = scalar_lea.sflag [#allocation3], 1
    %14 = vsyncpa %s13, 0
    %15 = vsyncpa [#allocation6], 0
    %16 = vsyncpa [#allocation9], 0
    %17 = vsyncpa [#allocation4], 0
    %s18 = scalar_lea.sflag [#allocation4], 1
    %19 = vsyncpa %s18, 0
    loop: start=0, step=1, limit=4
    $region2: #{model_embeddings_forward.1} parent=1 // loop_pre_header
      _
    $region3: #{model_embeddings_forward.1} parent=1 // loop_header
      %s21 = sphi 0, %s25
      %p22 = scmp.ge.s32.totalorder %s21, 4
      %s31 = sphi 0, %s33
      %s34 = sphi 0, %s31
      %s35 = sphi 0, %s34
      %s51 = sphi 0, %s35
      %s55 = sphi 0, %s55
      %s57 = sphi 0, %s55
      %s58 = sphi 0, %s57
      %s72 = sphi 0, %s58
      %s76 = sphi 0, %s76
      %s78 = sphi 0, %s76
      %s79 = sphi 0, %s78
      %s93 = sphi 0, %s79
      %s97 = sphi 0, %s97
      %s99 = sphi 0, %s97
      %s100 = sphi 0, %s99
      %s114 = sphi 0, %s100
      %s118 = sphi 0, %s118
      %s120 = sphi 0, %s118
      %s121 = sphi 0, %s120
      %s135 = sphi 0, %s121
      %s139 = sphi 0, %s139
      %s141 = sphi 0, %s139
      %s142 = sphi 0, %s141
      %s156 = sphi 0, %s142
      %s160 = sphi 0, %s160
      %s162 = sphi 0, %s160
      %s163 = sphi 0, %s162
      %s177 = sphi 0, %s163
      %s183 = sphi 0, %s185
      %s186 = sphi 0, %s183
      %s187 = sphi 0, %s186
      %s203 = sphi 0, %s187
    $region4: #{model_embeddings_forward.1} parent=1 // loop_header_branch
      %24 = sbr.rel (%p22) target = $region8
    $region5: #{model_embeddings_forward.1} parent=1 // loop_body
      %s26 = ssub.s32 %s21, 1
      %s27 = ssub.s32 %s21, 2
      %s28 = sadd.s32 %s21, 1
      %s29 = ssub.s32 %s21, %s28
      %p30 = scmp.eq.s32.totalorder %s29, 0
      %s32 = sadd.s32 %s31, 1
      %s33 = scalar_select %p30, %s31, %s32
      %p36 = pneg %p30
      %p37 = scmp.eq.s32.totalorder %s21, 1
      %p38 = por %p36, %p37
      %p39 = scmp.ne.s32.totalorder %s31, %s34
      %p40 = scmp.eq.s32.totalorder %s21, 0
      %p41 = por %p39, %p40
      %p42 = scmp.ne.s32.totalorder %s31, %s34
      %p43 = scmp.eq.s32.totalorder %s26, 1
      %p44 = por %p42, %p43
      %p45 = scmp.ne.s32.totalorder %s34, %s35
      %p46 = scmp.eq.s32.totalorder %s26, 0
      %p47 = por %p45, %p46
      %p48 = scmp.ne.s32.totalorder %s34, %s35
      %p49 = scmp.eq.s32.totalorder %s27, 1
      %p50 = por %p48, %p49
      %p52 = scmp.ne.s32.totalorder %s35, %s51
      %p53 = scmp.eq.s32.totalorder %s27, 0
      %p54 = por %p52, %p53
      %s56 = sadd.s32 %s55, 1
      %p59 = scmp.eq.s32.totalorder %s21, 1
      %p60 = scmp.ne.s32.totalorder %s55, %s57
      %p61 = scmp.eq.s32.totalorder %s21, 0
      %p62 = por %p60, %p61
      %p63 = scmp.ne.s32.totalorder %s55, %s57
      %p64 = scmp.eq.s32.totalorder %s26, 1
      %p65 = por %p63, %p64
      %p66 = scmp.ne.s32.totalorder %s57, %s58
      %p67 = scmp.eq.s32.totalorder %s26, 0
      %p68 = por %p66, %p67
      %p69 = scmp.ne.s32.totalorder %s57, %s58
      %p70 = scmp.eq.s32.totalorder %s27, 1
      %p71 = por %p69, %p70
      %p73 = scmp.ne.s32.totalorder %s58, %s72
      %p74 = scmp.eq.s32.totalorder %s27, 0
      %p75 = por %p73, %p74
      %s77 = sadd.s32 %s76, 1
      %p80 = scmp.eq.s32.totalorder %s21, 1
      %p81 = scmp.ne.s32.totalorder %s76, %s78
      %p82 = scmp.eq.s32.totalorder %s21, 0
      %p83 = por %p81, %p82
      %p84 = scmp.ne.s32.totalorder %s76, %s78
      %p85 = scmp.eq.s32.totalorder %s26, 1
      %p86 = por %p84, %p85
      %p87 = scmp.ne.s32.totalorder %s78, %s79
      %p88 = scmp.eq.s32.totalorder %s26, 0
      %p89 = por %p87, %p88
      %p90 = scmp.ne.s32.totalorder %s78, %s79
      %p91 = scmp.eq.s32.totalorder %s27, 1
      %p92 = por %p90, %p91
      %p94 = scmp.ne.s32.totalorder %s79, %s93
      %p95 = scmp.eq.s32.totalorder %s27, 0
      %p96 = por %p94, %p95
      %s98 = sadd.s32 %s97, 1
      %p101 = scmp.eq.s32.totalorder %s21, 1
      %p102 = scmp.ne.s32.totalorder %s97, %s99
      %p103 = scmp.eq.s32.totalorder %s21, 0
      %p104 = por %p102, %p103
      %p105 = scmp.ne.s32.totalorder %s97, %s99
      %p106 = scmp.eq.s32.totalorder %s26, 1
      %p107 = por %p105, %p106
      %p108 = scmp.ne.s32.totalorder %s99, %s100
      %p109 = scmp.eq.s32.totalorder %s26, 0
      %p110 = por %p108, %p109
      %p111 = scmp.ne.s32.totalorder %s99, %s100
      %p112 = scmp.eq.s32.totalorder %s27, 1
      %p113 = por %p111, %p112
      %p115 = scmp.ne.s32.totalorder %s100, %s114
      %p116 = scmp.eq.s32.totalorder %s27, 0
      %p117 = por %p115, %p116
      %s119 = sadd.s32 %s118, 1
      %p122 = scmp.eq.s32.totalorder %s21, 1
      %p123 = scmp.ne.s32.totalorder %s118, %s120
      %p124 = scmp.eq.s32.totalorder %s21, 0
      %p125 = por %p123, %p124
      %p126 = scmp.ne.s32.totalorder %s118, %s120
      %p127 = scmp.eq.s32.totalorder %s26, 1
      %p128 = por %p126, %p127
      %p129 = scmp.ne.s32.totalorder %s120, %s121
      %p130 = scmp.eq.s32.totalorder %s26, 0
      %p131 = por %p129, %p130
      %p132 = scmp.ne.s32.totalorder %s120, %s121
      %p133 = scmp.eq.s32.totalorder %s27, 1
      %p134 = por %p132, %p133
      %p136 = scmp.ne.s32.totalorder %s121, %s135
      %p137 = scmp.eq.s32.totalorder %s27, 0
      %p138 = por %p136, %p137
      %s140 = sadd.s32 %s139, 1
      %p143 = scmp.eq.s32.totalorder %s21, 1
      %p144 = scmp.ne.s32.totalorder %s139, %s141
      %p145 = scmp.eq.s32.totalorder %s21, 0
      %p146 = por %p144, %p145
      %p147 = scmp.ne.s32.totalorder %s139, %s141
      %p148 = scmp.eq.s32.totalorder %s26, 1
      %p149 = por %p147, %p148
      %p150 = scmp.ne.s32.totalorder %s141, %s142
      %p151 = scmp.eq.s32.totalorder %s26, 0
      %p152 = por %p150, %p151
      %p153 = scmp.ne.s32.totalorder %s141, %s142
      %p154 = scmp.eq.s32.totalorder %s27, 1
      %p155 = por %p153, %p154
      %p157 = scmp.ne.s32.totalorder %s142, %s156
      %p158 = scmp.eq.s32.totalorder %s27, 0
      %p159 = por %p157, %p158
      %s161 = sadd.s32 %s160, 1
      %p164 = scmp.eq.s32.totalorder %s21, 1
      %p165 = scmp.ne.s32.totalorder %s160, %s162
      %p166 = scmp.eq.s32.totalorder %s21, 0
      %p167 = por %p165, %p166
      %p168 = scmp.ne.s32.totalorder %s160, %s162
      %p169 = scmp.eq.s32.totalorder %s26, 1
      %p170 = por %p168, %p169
      %p171 = scmp.ne.s32.totalorder %s162, %s163
      %p172 = scmp.eq.s32.totalorder %s26, 0
      %p173 = por %p171, %p172
      %p174 = scmp.ne.s32.totalorder %s162, %s163
      %p175 = scmp.eq.s32.totalorder %s27, 1
      %p176 = por %p174, %p175
      %p178 = scmp.ne.s32.totalorder %s163, %s177
      %p179 = scmp.eq.s32.totalorder %s27, 0
      %p180 = por %p178, %p179
      %s181 = ssub.s32 %s21, %s28
      %p182 = scmp.eq.s32.totalorder %s181, 0
      %s184 = sadd.s32 %s183, 1
      %s185 = scalar_select %p182, %s183, %s184
      %p188 = pneg %p182
      %p189 = scmp.eq.s32.totalorder %s21, 1
      %p190 = por %p188, %p189
      %p191 = scmp.ne.s32.totalorder %s183, %s186
      %p192 = scmp.eq.s32.totalorder %s21, 0
      %p193 = por %p191, %p192
      %p194 = scmp.ne.s32.totalorder %s183, %s186
      %p195 = scmp.eq.s32.totalorder %s26, 1
      %p196 = por %p194, %p195
      %p197 = scmp.ne.s32.totalorder %s186, %s187
      %p198 = scmp.eq.s32.totalorder %s26, 0
      %p199 = por %p197, %p198
      %p200 = scmp.ne.s32.totalorder %s186, %s187
      %p201 = scmp.eq.s32.totalorder %s27, 1
      %p202 = por %p200, %p201
      %p204 = scmp.ne.s32.totalorder %s187, %s203
      %p205 = scmp.eq.s32.totalorder %s27, 0
      %p206 = por %p204, %p205
      %p207 = scmp.le.s32.totalorder 1, %s21
      %p208 = scmp.lt.s32.totalorder %s21, 3
      %p209 = pnand %p207, %p208
      %p210 = pneg %p209
      // Predicated region
      $region9: #{model_embeddings_forward.1} parent=5 // pred_check
        _
      $region10: #{model_embeddings_forward.1} parent=5 // pred_check_branch
        %212 = sbr.rel (%p209) target = $region12
      $region11: #{model_embeddings_forward.1} parent=5 // pred_region
        %s213 = ssub.s32 %s21, 1
        // Predicated region
        $region13: #{model_embeddings_forward.1} parent=11 // pred_check
          %p214 = pneg %p68
        $region14: #{model_embeddings_forward.1} parent=11 // pred_check_branch
          %216 = sbr.rel (%p214) target = $region16
        $region15: #{model_embeddings_forward.1} parent=11 // pred_region
          %s218 = ssub.s32 384, 384
          %219 = vsyncadd [#allocation6], %s218
          %s220 = sshll.u32 [#allocation5], 4
          %s221 = int_to_ptr.vmem [resolvable:$true] %s220
          %226 = dma.hbm_to_vmem [thread:$0]  %s1, 384, %s221, [#allocation6], 192, 192, 12
        $region16: #{model_embeddings_forward.1} parent=11 // pred_fallthru
          _
        // Predicated region
        $region17: #{model_embeddings_forward.1} parent=11 // pred_check
          %p227 = pneg %p89
        $region18: #{model_embeddings_forward.1} parent=11 // pred_check_branch
          %229 = sbr.rel (%p227) target = $region20
        $region19: #{model_embeddings_forward.1} parent=11 // pred_region
          %s231 = ssub.s32 6144, 6144
          %232 = vsyncadd [#allocation6], %s231
          %s233 = sshll.u32 [#allocation7], 4
          %s234 = int_to_ptr.vmem [resolvable:$true] %s233
          %239 = dma.hbm_to_vmem [thread:$0]  %s2, 6144, %s234, [#allocation6], 128, 128, 8
        $region20: #{model_embeddings_forward.1} parent=11 // pred_fallthru
          _
        // Predicated region
        $region21: #{model_embeddings_forward.1} parent=11 // pred_check
          %p240 = pneg %p110
        $region22: #{model_embeddings_forward.1} parent=11 // pred_check_branch
          %242 = sbr.rel (%p240) target = $region24
        $region23: #{model_embeddings_forward.1} parent=11 // pred_region
          %s244 = ssub.s32 6144, 6144
          %245 = vsyncadd [#allocation9], %s244
          %s246 = sshll.u32 [#allocation8], 4
          %s247 = int_to_ptr.vmem [resolvable:$true] %s246
          %252 = dma.hbm_to_vmem [thread:$0]  %s3, 6144, %s247, [#allocation9], 128, 128, 8
        $region24: #{model_embeddings_forward.1} parent=11 // pred_fallthru
          _
        // Predicated region
        $region25: #{model_embeddings_forward.1} parent=11 // pred_check
          %p253 = pneg %p131
        $region26: #{model_embeddings_forward.1} parent=11 // pred_check_branch
          %255 = sbr.rel (%p253) target = $region28
        $region27: #{model_embeddings_forward.1} parent=11 // pred_region
          _
        $region28: #{model_embeddings_forward.1} parent=11 // pred_fallthru
          _
        // Predicated region
        $region29: #{model_embeddings_forward.1} parent=11 // pred_check
          %p256 = pneg %p152
        $region30: #{model_embeddings_forward.1} parent=11 // pred_check_branch
          %258 = sbr.rel (%p256) target = $region32
        $region31: #{model_embeddings_forward.1} parent=11 // pred_region
          %s260 = ssub.s32 512, 512
          %261 = vsyncadd [#allocation9], %s260
          %s262 = sshll.u32 [#allocation10], 4
          %s263 = int_to_ptr.vmem [resolvable:$true] %s262
          %268 = dma.hbm_to_vmem [thread:$0]  %s5, 512, %s263, [#allocation9], 128, 128, 8
        $region32: #{model_embeddings_forward.1} parent=11 // pred_fallthru
          _
        // Predicated region
        $region33: #{model_embeddings_forward.1} parent=11 // pred_check
          %p269 = pneg %p173
        $region34: #{model_embeddings_forward.1} parent=11 // pred_check_branch
          %271 = sbr.rel (%p269) target = $region36
        $region35: #{model_embeddings_forward.1} parent=11 // pred_region
          _
        $region36: #{model_embeddings_forward.1} parent=11 // pred_fallthru
          _
      $region12: #{model_embeddings_forward.1} parent=5 // pred_fallthru
        _
      %p272 = scmp.lt.s32.totalorder %s21, 2
      // Predicated region
      $region37: #{model_embeddings_forward.1} parent=5 // pred_check
        %p273 = pneg %p272
      $region38: #{model_embeddings_forward.1} parent=5 // pred_check_branch
        %275 = sbr.rel (%p273) target = $region40
      $region39: #{model_embeddings_forward.1} parent=5 // pred_region
        // Predicated region
        $region41: #{model_embeddings_forward.1} parent=39 // pred_check
          %p276 = pneg %p41
        $region42: #{model_embeddings_forward.1} parent=39 // pred_check_branch
          %278 = sbr.rel (%p276) target = $region44
        $region43: #{model_embeddings_forward.1} parent=39 // pred_region
          %s279 = sand.u32 %s31, 1
          %s280 = scalar_lea.sflag [#allocation3], %s279
          %s281 = sand.u32 %s31, 1
          %s282 = smul.addr %s281, 8
          %s283 = scalar_lea.vmem [#allocation2], %s282
          %s285 = ssub.s32 128, 128
          %286 = vsyncadd %s280, %s285
          %s287 = smul.addr %s21, 128
          %s288 = scalar_lea.hbm %s0, %s287
          %s290 = sshll.u32 %s283, 4
          %s291 = int_to_ptr.vmem [resolvable:$true] %s290
          %293 = dma.hbm_to_vmem [thread:$0]  %s288, 128, %s291, %s280
        $region44: #{model_embeddings_forward.1} parent=39 // pred_fallthru
          _
      $region40: #{model_embeddings_forward.1} parent=5 // pred_fallthru
        _
      %p294 = scmp.le.s32.totalorder 1, %s21
      %p295 = scmp.lt.s32.totalorder %s21, 3
      %p296 = pnand %p294, %p295
      %p297 = pneg %p296
      // Predicated region
      $region45: #{model_embeddings_forward.1} parent=5 // pred_check
        _
      $region46: #{model_embeddings_forward.1} parent=5 // pred_check_branch
        %299 = sbr.rel (%p296) target = $region48
      $region47: #{model_embeddings_forward.1} parent=5 // pred_region
        %s300 = ssub.s32 %s21, 1
        %s301 = sand.u32 %s34, 1
        %s302 = scalar_lea.sflag [#allocation3], %s301
        %s303 = sand.u32 %s34, 1
        %s304 = smul.addr %s303, 8
        %s305 = scalar_lea.vmem [#allocation2], %s304
        // Predicated region
        $region49: #{model_embeddings_forward.1} parent=47 // pred_check
          %p306 = pneg %p47
        $region50: #{model_embeddings_forward.1} parent=47 // pred_check_branch
          %308 = sbr.rel (%p306) target = $region52
        $region51: #{model_embeddings_forward.1} parent=47 // pred_region
          %309 = dma.done %s302, 128
        $region52: #{model_embeddings_forward.1} parent=47 // pred_fallthru
          _
        // Predicated region
        $region53: #{model_embeddings_forward.1} parent=47 // pred_check
          %p310 = pneg %p68
        $region54: #{model_embeddings_forward.1} parent=47 // pred_check_branch
          %312 = sbr.rel (%p310) target = $region56
        $region55: #{model_embeddings_forward.1} parent=47 // pred_region
          %313 = dma.done [#allocation6], 384
        $region56: #{model_embeddings_forward.1} parent=47 // pred_fallthru
          _
        // Predicated region
        $region57: #{model_embeddings_forward.1} parent=47 // pred_check
          %p314 = pneg %p89
        $region58: #{model_embeddings_forward.1} parent=47 // pred_check_branch
          %316 = sbr.rel (%p314) target = $region60
        $region59: #{model_embeddings_forward.1} parent=47 // pred_region
          %317 = dma.done [#allocation6], 6144
        $region60: #{model_embeddings_forward.1} parent=47 // pred_fallthru
          _
        // Predicated region
        $region61: #{model_embeddings_forward.1} parent=47 // pred_check
          %p318 = pneg %p110
        $region62: #{model_embeddings_forward.1} parent=47 // pred_check_branch
          %320 = sbr.rel (%p318) target = $region64
        $region63: #{model_embeddings_forward.1} parent=47 // pred_region
          %321 = dma.done [#allocation9], 6144
        $region64: #{model_embeddings_forward.1} parent=47 // pred_fallthru
          _
        // Predicated region
        $region65: #{model_embeddings_forward.1} parent=47 // pred_check
          %p322 = pneg %p152
        $region66: #{model_embeddings_forward.1} parent=47 // pred_check_branch
          %324 = sbr.rel (%p322) target = $region68
        $region67: #{model_embeddings_forward.1} parent=47 // pred_region
          %325 = dma.done [#allocation9], 512
        $region68: #{model_embeddings_forward.1} parent=47 // pred_fallthru
          _
        %s326 = sand.u32 %s34, 1
        %s327 = scalar_lea.sflag [#allocation3], %s326
        %s328 = sand.u32 %s34, 1
        %s329 = smul.addr %s328, 8
        %s330 = scalar_lea.vmem [#allocation2], %s329
        %p331 = pneg %p47
        %p332 = pneg %p44
        %p333 = pneg %p68
        %p334 = pneg %p65
        %p335 = pneg %p89
        %p336 = pneg %p86
        %p337 = pneg %p110
        %p338 = pneg %p107
        %p339 = pneg %p131
        %p340 = pneg %p128
        %p341 = pneg %p152
        %p342 = pneg %p149
        %p343 = pneg %p173
        %p344 = pneg %p170
        %p345 = pneg %p199
        %p346 = pneg %p196
        %s347 = sand.u32 %s186, 1
        %s348 = scalar_lea.sflag [#allocation4], %s347
        %s349 = sand.u32 %s186, 1
        %s350 = smul.addr %s349, 8
        %s351 = scalar_lea.vmem [#allocation11], %s350
        %v353 = vld [vmem:[%s305] sm:$0xff]
        %v354 = vcvt.s32.f32 %v353
        %v355 = vpack.c.bf16 %v354, %v354
        %v356 = vld [vmem:[#allocation5] sm:$0xff]
        %v357 = vld [vmem:[#allocation5 + $0x8] sm:$0xf]
        %v358 = vld [vmem:[#allocation5 + $0xc] sm:$0x33]
        %v359 = vld [vmem:[#allocation5 + $0x14] sm:$0x3]
        %v364 = vunpack.c.l.b16 %v356
        %v365 = vunpack.c.h.b16 %v356
        %v366 = vunpack.c.l.b16 %v357
        %v367 = vunpack.c.l.b16 %v358
        %v368 = vunpack.c.h.b16 %v358
        %v369 = vunpack.c.l.b16 %v359
        %v370 = vpack.c.b16 %v367, %v364
        %v371 = vpack.c.b16 %v368, %v365
        %v372 = vpack.c.b16 %v369, %v366
        %vm373 = vcmask 97280
        %v375 = vsel %vm373, %v355, 0
        %vm377 = vcmask 1045504
        %v379 = vsel %vm377, %v370, 0
        %v382 = vsel %vm377, %v371, 0
        %v385 = vsel %vm377, %v372, 0
        %387 = vmatprep.subr.bf16.mxu0 0
        %388 = vmatpush1.bf16.msra.mxu0 0
        %389 = vmatprep.subr.bf16.mxu0 0
        %390 = vmatpush1.bf16.msra.mxu0 0
        %391 = vmatprep.subr.bf16.mxu0 0
        %392 = vmatpush1.bf16.msra.mxu0 0
        %393 = vmatprep.subr.bf16.mxu0 0
        %394 = vmatpush1.bf16.msra.mxu0 0
        %395 = vmatprep.subr.bf16.mxu0 0
        %396 = vmatpush1.bf16.msra.mxu0 0
        %397 = vmatprep.subr.bf16.mxu0 0
        %398 = vmatpush1.bf16.msra.mxu0 0
        %399 = vmatprep.subr.bf16.mxu0 0
        %400 = vmatpush1.bf16.msra.mxu0 0
        %401 = vmatprep.subr.bf16.mxu0 %v382
        %402 = vmatpush1.bf16.msra.mxu0 %v379
        %403 = vmatprep.subr.bf16.mxu0 0
        %404 = vmatpush2.bf16.msra.mxu0 0
        %405 = vmatprep.subr.bf16.mxu0 0
        %406 = vmatpush2.bf16.msra.mxu0 0
        %407 = vmatprep.subr.bf16.mxu0 0
        %408 = vmatpush2.bf16.msra.mxu0 0
        %409 = vmatprep.subr.bf16.mxu0 0
        %410 = vmatpush2.bf16.msra.mxu0 0
        %411 = vmatprep.subr.bf16.mxu0 0
        %412 = vmatpush2.bf16.msra.mxu0 0
        %413 = vmatprep.subr.bf16.mxu0 0
        %414 = vmatpush2.bf16.msra.mxu0 0
        %415 = vmatprep.subr.bf16.mxu0 0
        %416 = vmatpush2.bf16.msra.mxu0 0
        %417 = vmatprep.subr.bf16.mxu0 0
        %418 = vmatpush2.bf16.msra.mxu0 0
        %419 = vmatprep.mubr.bf16.mxu0 0
        %420 = vmatmul.mubr.bf16.gmra.mxu0 %v375
        %v421 = vpop.f32.mrf.mxu0
        %v422 = vadd.f32 0.0, %v421
        %v423 = vpop.f32.mrf.mxu0
        %v424 = vadd.f32 0.0, %v423
        %v425 = vpop.f32.mrf.mxu0
        %v426 = vpop.f32.mrf.mxu0
        %427 = vdwg.mxu0
        %428 = vmatprep.subr.bf16.mxu0 0
        %429 = vmatpush1.bf16.msra.mxu0 0
        %430 = vmatprep.subr.bf16.mxu0 0
        %431 = vmatpush1.bf16.msra.mxu0 0
        %432 = vmatprep.subr.bf16.mxu0 0
        %433 = vmatpush1.bf16.msra.mxu0 0
        %434 = vmatprep.subr.bf16.mxu0 0
        %435 = vmatpush1.bf16.msra.mxu0 0
        %436 = vmatprep.subr.bf16.mxu0 0
        %437 = vmatpush1.bf16.msra.mxu0 0
        %438 = vmatprep.subr.bf16.mxu0 0
        %439 = vmatpush1.bf16.msra.mxu0 0
        %440 = vmatprep.subr.bf16.mxu0 0
        %441 = vmatpush1.bf16.msra.mxu0 0
        %442 = vmatprep.subr.bf16.mxu0 0
        %443 = vmatpush1.bf16.msra.mxu0 %v385
        %444 = vmatprep.subr.bf16.mxu0 0
        %445 = vmatpush2.bf16.msra.mxu0 0
        %446 = vmatprep.subr.bf16.mxu0 0
        %447 = vmatpush2.bf16.msra.mxu0 0
        %448 = vmatprep.subr.bf16.mxu0 0
        %449 = vmatpush2.bf16.msra.mxu0 0
        %450 = vmatprep.subr.bf16.mxu0 0
        %451 = vmatpush2.bf16.msra.mxu0 0
        %452 = vmatprep.subr.bf16.mxu0 0
        %453 = vmatpush2.bf16.msra.mxu0 0
        %454 = vmatprep.subr.bf16.mxu0 0
        %455 = vmatpush2.bf16.msra.mxu0 0
        %456 = vmatprep.subr.bf16.mxu0 0
        %457 = vmatpush2.bf16.msra.mxu0 0
        %458 = vmatprep.subr.bf16.mxu0 0
        %459 = vmatpush2.bf16.msra.mxu0 0
        %460 = vmatprep.mubr.bf16.mxu0 0
        %461 = vmatmul.mubr.bf16.gmra.mxu0 %v375
        %v462 = vpop.f32.mrf.mxu0
        %v463 = vadd.f32 0.0, %v462
        %v464 = vpop.f32.mrf.mxu0
        %v465 = vpop.f32.mrf.mxu0
        %v466 = vpop.f32.mrf.mxu0
        %467 = vdwg.mxu0
        %v468 = vlaneseq
        %v469 = vand.u32 %v468, 127
        %v470 = vadd.s32 %v469, 128
        %v471 = vadd.s32 %v469, 256
        %v472 = vand.u32 %v469, 31
        %v473 = vand.u32 %v470, 31
        %v474 = vand.u32 %v471, 31
        %v475 = vcvt.s32.f32 %v472
        %v476 = vcvt.s32.f32 %v473
        %v477 = vcvt.s32.f32 %v474
        %vm478 = vcmp.eq.f32.partialorder %v422, %v475
        %vm479 = vcmp.eq.f32.partialorder %v424, %v476
        %vm480 = vcmp.eq.f32.partialorder %v463, %v477
        %v481 = vsel %vm478, 1.0, 0.0
        %v482 = vsel %vm479, 1.0, 0.0
        %v483 = vsel %vm480, 1.0, 0.0
        %v484 = vpack.c.bf16 %v481, %v481
        %v485 = vpack.c.bf16 %v482, %v482
        %v486 = vpack.c.bf16 %v483, %v483
        %v487 = vld [vmem:[#allocation7] sm:$0xff]
        %v488 = vld [vmem:[#allocation7 + $0x8] sm:$0xff]
        %v489 = vld [vmem:[#allocation7 + $0x10] sm:$0xff]
        %v490 = vld [vmem:[#allocation7 + $0x18] sm:$0xff]
        %v491 = vld [vmem:[#allocation7 + $0x20] sm:$0xff]
        %v492 = vld [vmem:[#allocation7 + $0x28] sm:$0xff]
        %v493 = vld [vmem:[#allocation7 + $0x30] sm:$0xff]
        %v494 = vld [vmem:[#allocation7 + $0x38] sm:$0xff]
        %v495 = vld [vmem:[#allocation7 + $0x40] sm:$0xff]
        %v496 = vld [vmem:[#allocation7 + $0x48] sm:$0xff]
        %v497 = vld [vmem:[#allocation7 + $0x50] sm:$0xff]
        %v498 = vld [vmem:[#allocation7 + $0x58] sm:$0xff]
        %v499 = vld [vmem:[#allocation7 + $0x60] sm:$0xff]
        %v500 = vld [vmem:[#allocation7 + $0x68] sm:$0xff]
        %v501 = vld [vmem:[#allocation7 + $0x70] sm:$0xff]
        %v502 = vld [vmem:[#allocation7 + $0x78] sm:$0xff]
        %v503 = vld [vmem:[#allocation7 + $0x80] sm:$0xff]
        %v504 = vld [vmem:[#allocation7 + $0x88] sm:$0xff]
        %v505 = vld [vmem:[#allocation7 + $0x90] sm:$0xff]
        %v506 = vld [vmem:[#allocation7 + $0x98] sm:$0xff]
        %v507 = vld [vmem:[#allocation7 + $0xa0] sm:$0xff]
        %v508 = vld [vmem:[#allocation7 + $0xa8] sm:$0xff]
        %v509 = vld [vmem:[#allocation7 + $0xb0] sm:$0xff]
        %v510 = vld [vmem:[#allocation7 + $0xb8] sm:$0xff]
        %v511 = vld [vmem:[#allocation7 + $0xc0] sm:$0xff]
        %v512 = vld [vmem:[#allocation7 + $0xc8] sm:$0xff]
        %v513 = vld [vmem:[#allocation7 + $0xd0] sm:$0xff]
        %v514 = vld [vmem:[#allocation7 + $0xd8] sm:$0xff]
        %v515 = vld [vmem:[#allocation7 + $0xe0] sm:$0xff]
        %v516 = vld [vmem:[#allocation7 + $0xe8] sm:$0xff]
        %v517 = vld [vmem:[#allocation7 + $0xf0] sm:$0xff]
        %v518 = vld [vmem:[#allocation7 + $0xf8] sm:$0xff]
        %v519 = vld [vmem:[#allocation7 + $0x100] sm:$0xff]
        %v520 = vld [vmem:[#allocation7 + $0x108] sm:$0xff]
        %v521 = vld [vmem:[#allocation7 + $0x110] sm:$0xff]
        %v522 = vld [vmem:[#allocation7 + $0x118] sm:$0xff]
        %v523 = vld [vmem:[#allocation7 + $0x120] sm:$0xff]
        %v524 = vld [vmem:[#allocation7 + $0x128] sm:$0xff]
        %v525 = vld [vmem:[#allocation7 + $0x130] sm:$0xff]
        %v526 = vld [vmem:[#allocation7 + $0x138] sm:$0xff]
        %v527 = vld [vmem:[#allocation7 + $0x140] sm:$0xff]
        %v528 = vld [vmem:[#allocation7 + $0x148] sm:$0xff]
        %v529 = vld [vmem:[#allocation7 + $0x150] sm:$0xff]
        %v530 = vld [vmem:[#allocation7 + $0x158] sm:$0xff]
        %v531 = vld [vmem:[#allocation7 + $0x160] sm:$0xff]
        %v532 = vld [vmem:[#allocation7 + $0x168] sm:$0xff]
        %v533 = vld [vmem:[#allocation7 + $0x170] sm:$0xff]
        %v534 = vld [vmem:[#allocation7 + $0x178] sm:$0xff]
        %v535 = vld [vmem:[#allocation8] sm:$0xff]
        %v536 = vld [vmem:[#allocation8 + $0x8] sm:$0xff]
        %v537 = vld [vmem:[#allocation8 + $0x10] sm:$0xff]
        %v538 = vld [vmem:[#allocation8 + $0x18] sm:$0xff]
        %v539 = vld [vmem:[#allocation8 + $0x20] sm:$0xff]
        %v540 = vld [vmem:[#allocation8 + $0x28] sm:$0xff]
        %v541 = vld [vmem:[#allocation8 + $0x30] sm:$0xff]
        %v542 = vld [vmem:[#allocation8 + $0x38] sm:$0xff]
        %v543 = vld [vmem:[#allocation8 + $0x40] sm:$0xff]
        %v544 = vld [vmem:[#allocation8 + $0x48] sm:$0xff]
        %v545 = vld [vmem:[#allocation8 + $0x50] sm:$0xff]
        %v546 = vld [vmem:[#allocation8 + $0x58] sm:$0xff]
        %v547 = vld [vmem:[#allocation8 + $0x60] sm:$0xff]
        %v548 = vld [vmem:[#allocation8 + $0x68] sm:$0xff]
        %v549 = vld [vmem:[#allocation8 + $0x70] sm:$0xff]
        %v550 = vld [vmem:[#allocation8 + $0x78] sm:$0xff]
        %v551 = vld [vmem:[#allocation8 + $0x80] sm:$0xff]
        %v552 = vld [vmem:[#allocation8 + $0x88] sm:$0xff]
        %v553 = vld [vmem:[#allocation8 + $0x90] sm:$0xff]
        %v554 = vld [vmem:[#allocation8 + $0x98] sm:$0xff]
        %v555 = vld [vmem:[#allocation8 + $0xa0] sm:$0xff]
        %v556 = vld [vmem:[#allocation8 + $0xa8] sm:$0xff]
        %v557 = vld [vmem:[#allocation8 + $0xb0] sm:$0xff]
        %v558 = vld [vmem:[#allocation8 + $0xb8] sm:$0xff]
        %v559 = vld [vmem:[#allocation8 + $0xc0] sm:$0xff]
        %v560 = vld [vmem:[#allocation8 + $0xc8] sm:$0xff]
        %v561 = vld [vmem:[#allocation8 + $0xd0] sm:$0xff]
        %v562 = vld [vmem:[#allocation8 + $0xd8] sm:$0xff]
        %v563 = vld [vmem:[#allocation8 + $0xe0] sm:$0xff]
        %v564 = vld [vmem:[#allocation8 + $0xe8] sm:$0xff]
        %v565 = vld [vmem:[#allocation8 + $0xf0] sm:$0xff]
        %v566 = vld [vmem:[#allocation8 + $0xf8] sm:$0xff]
        %v567 = vld [vmem:[#allocation8 + $0x100] sm:$0xff]
        %v568 = vld [vmem:[#allocation8 + $0x108] sm:$0xff]
        %v569 = vld [vmem:[#allocation8 + $0x110] sm:$0xff]
        %v570 = vld [vmem:[#allocation8 + $0x118] sm:$0xff]
        %v571 = vld [vmem:[#allocation8 + $0x120] sm:$0xff]
        %v572 = vld [vmem:[#allocation8 + $0x128] sm:$0xff]
        %v573 = vld [vmem:[#allocation8 + $0x130] sm:$0xff]
        %v574 = vld [vmem:[#allocation8 + $0x138] sm:$0xff]
        %v575 = vld [vmem:[#allocation8 + $0x140] sm:$0xff]
        %v576 = vld [vmem:[#allocation8 + $0x148] sm:$0xff]
        %v577 = vld [vmem:[#allocation8 + $0x150] sm:$0xff]
        %v578 = vld [vmem:[#allocation8 + $0x158] sm:$0xff]
        %v579 = vld [vmem:[#allocation8 + $0x160] sm:$0xff]
        %v580 = vld [vmem:[#allocation8 + $0x168] sm:$0xff]
        %v581 = vld [vmem:[#allocation8 + $0x170] sm:$0xff]
        %v582 = vld [vmem:[#allocation8 + $0x178] sm:$0xff]
        %v631 = vunpack.c.l.b16 %v535
        %v632 = vunpack.c.h.b16 %v535
        %v633 = vunpack.c.l.b16 %v536
        %v634 = vunpack.c.h.b16 %v536
        %v635 = vunpack.c.l.b16 %v537
        %v636 = vunpack.c.h.b16 %v537
        %v637 = vunpack.c.l.b16 %v538
        %v638 = vunpack.c.h.b16 %v538
        %v639 = vunpack.c.l.b16 %v539
        %v640 = vunpack.c.h.b16 %v539
        %v641 = vunpack.c.l.b16 %v540
        %v642 = vunpack.c.h.b16 %v540
        %v643 = vunpack.c.l.b16 %v541
        %v644 = vunpack.c.h.b16 %v541
        %v645 = vunpack.c.l.b16 %v542
        %v646 = vunpack.c.h.b16 %v542
        %v647 = vunpack.c.l.b16 %v543
        %v648 = vunpack.c.h.b16 %v543
        %v649 = vunpack.c.l.b16 %v544
        %v650 = vunpack.c.h.b16 %v544
        %v651 = vunpack.c.l.b16 %v545
        %v652 = vunpack.c.h.b16 %v545
        %v653 = vunpack.c.l.b16 %v546
        %v654 = vunpack.c.h.b16 %v546
        %v655 = vunpack.c.l.b16 %v547
        %v656 = vunpack.c.h.b16 %v547
        %v657 = vunpack.c.l.b16 %v548
        %v658 = vunpack.c.h.b16 %v548
        %v659 = vunpack.c.l.b16 %v549
        %v660 = vunpack.c.h.b16 %v549
        %v661 = vunpack.c.l.b16 %v550
        %v662 = vunpack.c.h.b16 %v550
        %v663 = vunpack.c.l.b16 %v551
        %v664 = vunpack.c.h.b16 %v551
        %v665 = vunpack.c.l.b16 %v552
        %v666 = vunpack.c.h.b16 %v552
        %v667 = vunpack.c.l.b16 %v553
        %v668 = vunpack.c.h.b16 %v553
        %v669 = vunpack.c.l.b16 %v554
        %v670 = vunpack.c.h.b16 %v554
        %v671 = vunpack.c.l.b16 %v555
        %v672 = vunpack.c.h.b16 %v555
        %v673 = vunpack.c.l.b16 %v556
        %v674 = vunpack.c.h.b16 %v556
        %v675 = vunpack.c.l.b16 %v557
        %v676 = vunpack.c.h.b16 %v557
        %v677 = vunpack.c.l.b16 %v558
        %v678 = vunpack.c.h.b16 %v558
        %v679 = vunpack.c.l.b16 %v559
        %v680 = vunpack.c.h.b16 %v559
        %v681 = vunpack.c.l.b16 %v560
        %v682 = vunpack.c.h.b16 %v560
        %v683 = vunpack.c.l.b16 %v561
        %v684 = vunpack.c.h.b16 %v561
        %v685 = vunpack.c.l.b16 %v562
        %v686 = vunpack.c.h.b16 %v562
        %v687 = vunpack.c.l.b16 %v563
        %v688 = vunpack.c.h.b16 %v563
        %v689 = vunpack.c.l.b16 %v564
        %v690 = vunpack.c.h.b16 %v564
        %v691 = vunpack.c.l.b16 %v565
        %v692 = vunpack.c.h.b16 %v565
        %v693 = vunpack.c.l.b16 %v566
        %v694 = vunpack.c.h.b16 %v566
        %v695 = vunpack.c.l.b16 %v567
        %v696 = vunpack.c.h.b16 %v567
        %v697 = vunpack.c.l.b16 %v568
        %v698 = vunpack.c.h.b16 %v568
        %v699 = vunpack.c.l.b16 %v569
        %v700 = vunpack.c.h.b16 %v569
        %v701 = vunpack.c.l.b16 %v570
        %v702 = vunpack.c.h.b16 %v570
        %v703 = vunpack.c.l.b16 %v571
        %v704 = vunpack.c.h.b16 %v571
        %v705 = vunpack.c.l.b16 %v572
        %v706 = vunpack.c.h.b16 %v572
        %v707 = vunpack.c.l.b16 %v573
        %v708 = vunpack.c.h.b16 %v573
        %v709 = vunpack.c.l.b16 %v574
        %v710 = vunpack.c.h.b16 %v574
        %v711 = vunpack.c.l.b16 %v575
        %v712 = vunpack.c.h.b16 %v575
        %v713 = vunpack.c.l.b16 %v576
        %v714 = vunpack.c.h.b16 %v576
        %v715 = vunpack.c.l.b16 %v577
        %v716 = vunpack.c.h.b16 %v577
        %v717 = vunpack.c.l.b16 %v578
        %v718 = vunpack.c.h.b16 %v578
        %v719 = vunpack.c.l.b16 %v579
        %v720 = vunpack.c.h.b16 %v579
        %v721 = vunpack.c.l.b16 %v580
        %v722 = vunpack.c.h.b16 %v580
        %v723 = vunpack.c.l.b16 %v581
        %v724 = vunpack.c.h.b16 %v581
        %v725 = vunpack.c.l.b16 %v582
        %v726 = vunpack.c.h.b16 %v582
        %v727 = vpack.c.b16 %v633, %v631
        %v728 = vpack.c.b16 %v634, %v632
        %v729 = vpack.c.b16 %v637, %v635
        %v730 = vpack.c.b16 %v638, %v636
        %v731 = vpack.c.b16 %v641, %v639
        %v732 = vpack.c.b16 %v642, %v640
        %v733 = vpack.c.b16 %v645, %v643
        %v734 = vpack.c.b16 %v646, %v644
        %v735 = vpack.c.b16 %v649, %v647
        %v736 = vpack.c.b16 %v650, %v648
        %v737 = vpack.c.b16 %v653, %v651
        %v738 = vpack.c.b16 %v654, %v652
        %v739 = vpack.c.b16 %v657, %v655
        %v740 = vpack.c.b16 %v658, %v656
        %v741 = vpack.c.b16 %v661, %v659
        %v742 = vpack.c.b16 %v662, %v660
        %v743 = vpack.c.b16 %v665, %v663
        %v744 = vpack.c.b16 %v666, %v664
        %v745 = vpack.c.b16 %v669, %v667
        %v746 = vpack.c.b16 %v670, %v668
        %v747 = vpack.c.b16 %v673, %v671
        %v748 = vpack.c.b16 %v674, %v672
        %v749 = vpack.c.b16 %v677, %v675
        %v750 = vpack.c.b16 %v678, %v676
        %v751 = vpack.c.b16 %v681, %v679
        %v752 = vpack.c.b16 %v682, %v680
        %v753 = vpack.c.b16 %v685, %v683
        %v754 = vpack.c.b16 %v686, %v684
        %v755 = vpack.c.b16 %v689, %v687
        %v756 = vpack.c.b16 %v690, %v688
        %v757 = vpack.c.b16 %v693, %v691
        %v758 = vpack.c.b16 %v694, %v692
        %v759 = vpack.c.b16 %v697, %v695
        %v760 = vpack.c.b16 %v698, %v696
        %v761 = vpack.c.b16 %v701, %v699
        %v762 = vpack.c.b16 %v702, %v700
        %v763 = vpack.c.b16 %v705, %v703
        %v764 = vpack.c.b16 %v706, %v704
        %v765 = vpack.c.b16 %v709, %v707
        %v766 = vpack.c.b16 %v710, %v708
        %v767 = vpack.c.b16 %v713, %v711
        %v768 = vpack.c.b16 %v714, %v712
        %v769 = vpack.c.b16 %v717, %v715
        %v770 = vpack.c.b16 %v718, %v716
        %v771 = vpack.c.b16 %v721, %v719
        %v772 = vpack.c.b16 %v722, %v720
        %v773 = vpack.c.b16 %v725, %v723
        %v774 = vpack.c.b16 %v726, %v724
        %823 = vmatprep.subr.bf16.mxu0 %v742
        %824 = vmatpush1.bf16.msra.mxu0 %v741
        %825 = vmatprep.subr.bf16.mxu0 %v740
        %826 = vmatpush1.bf16.msra.mxu0 %v739
        %827 = vmatprep.subr.bf16.mxu0 %v738
        %828 = vmatpush1.bf16.msra.mxu0 %v737
        %829 = vmatprep.subr.bf16.mxu0 %v736
        %830 = vmatpush1.bf16.msra.mxu0 %v735
        %831 = vmatprep.subr.bf16.mxu0 %v734
        %832 = vmatpush1.bf16.msra.mxu0 %v733
        %833 = vmatprep.subr.bf16.mxu0 %v732
        %834 = vmatpush1.bf16.msra.mxu0 %v731
        %835 = vmatprep.subr.bf16.mxu0 %v730
        %836 = vmatpush1.bf16.msra.mxu0 %v729
        %837 = vmatprep.subr.bf16.mxu0 %v728
        %838 = vmatpush1.bf16.msra.mxu0 %v727
        %839 = vmatprep.subr.bf16.mxu0 %v758
        %840 = vmatpush2.bf16.msra.mxu0 %v757
        %841 = vmatprep.subr.bf16.mxu0 %v756
        %842 = vmatpush2.bf16.msra.mxu0 %v755
        %843 = vmatprep.subr.bf16.mxu0 %v754
        %844 = vmatpush2.bf16.msra.mxu0 %v753
        %845 = vmatprep.subr.bf16.mxu0 %v752
        %846 = vmatpush2.bf16.msra.mxu0 %v751
        %847 = vmatprep.subr.bf16.mxu0 %v750
        %848 = vmatpush2.bf16.msra.mxu0 %v749
        %849 = vmatprep.subr.bf16.mxu0 %v748
        %850 = vmatpush2.bf16.msra.mxu0 %v747
        %851 = vmatprep.subr.bf16.mxu0 %v746
        %852 = vmatpush2.bf16.msra.mxu0 %v745
        %853 = vmatprep.subr.bf16.mxu0 %v744
        %854 = vmatpush2.bf16.msra.mxu0 %v743
        %855 = vmatprep.mubr.bf16.mxu0 %v485
        %856 = vmatmul.mubr.bf16.gmra.mxu0 %v484
        %v857 = vpop.f32.mrf.mxu0
        %v858 = vadd.f32 0.0, %v857
        %v859 = vpop.f32.mrf.mxu0
        %v860 = vadd.f32 0.0, %v859
        %v861 = vpop.f32.mrf.mxu0
        %v862 = vpop.f32.mrf.mxu0
        %863 = vdwg.mxu0
        %864 = vmatprep.subr.bf16.mxu0 %v774
        %865 = vmatpush1.bf16.msra.mxu0 %v773
        %866 = vmatprep.subr.bf16.mxu0 %v772
        %867 = vmatpush1.bf16.msra.mxu0 %v771
        %868 = vmatprep.subr.bf16.mxu0 %v770
        %869 = vmatpush1.bf16.msra.mxu0 %v769
        %870 = vmatprep.subr.bf16.mxu0 %v768
        %871 = vmatpush1.bf16.msra.mxu0 %v767
        %872 = vmatprep.subr.bf16.mxu0 %v766
        %873 = vmatpush1.bf16.msra.mxu0 %v765
        %874 = vmatprep.subr.bf16.mxu0 %v764
        %875 = vmatpush1.bf16.msra.mxu0 %v763
        %876 = vmatprep.subr.bf16.mxu0 %v762
        %877 = vmatpush1.bf16.msra.mxu0 %v761
        %878 = vmatprep.subr.bf16.mxu0 %v760
        %879 = vmatpush1.bf16.msra.mxu0 %v759
        %880 = vmatprep.subr.bf16.mxu0 0
        %881 = vmatpush2.bf16.msra.mxu0 0
        %882 = vmatprep.subr.bf16.mxu0 0
        %883 = vmatpush2.bf16.msra.mxu0 0
        %884 = vmatprep.subr.bf16.mxu0 0
        %885 = vmatpush2.bf16.msra.mxu0 0
        %886 = vmatprep.subr.bf16.mxu0 0
        %887 = vmatpush2.bf16.msra.mxu0 0
        %888 = vmatprep.subr.bf16.mxu0 0
        %889 = vmatpush2.bf16.msra.mxu0 0
        %890 = vmatprep.subr.bf16.mxu0 0
        %891 = vmatpush2.bf16.msra.mxu0 0
        %892 = vmatprep.subr.bf16.mxu0 0
        %893 = vmatpush2.bf16.msra.mxu0 0
        %894 = vmatprep.subr.bf16.mxu0 0
        %895 = vmatpush2.bf16.msra.mxu0 0
        %896 = vmatprep.mubr.bf16.mxu0 0
        %897 = vmatmul.mubr.bf16.gmra.mxu0 %v486
        %v898 = vpop.f32.mrf.mxu0
        %v899 = vadd.f32 %v858, %v898
        %v900 = vpop.f32.mrf.mxu0
        %v901 = vadd.f32 %v860, %v900
        %v902 = vpop.f32.mrf.mxu0
        %v903 = vpop.f32.mrf.mxu0
        %904 = vdwg.mxu0
        %v953 = vunpack.c.l.b16 %v487
        %v954 = vunpack.c.h.b16 %v487
        %v955 = vunpack.c.l.b16 %v488
        %v956 = vunpack.c.h.b16 %v488
        %v957 = vunpack.c.l.b16 %v489
        %v958 = vunpack.c.h.b16 %v489
        %v959 = vunpack.c.l.b16 %v490
        %v960 = vunpack.c.h.b16 %v490
        %v961 = vunpack.c.l.b16 %v491
        %v962 = vunpack.c.h.b16 %v491
        %v963 = vunpack.c.l.b16 %v492
        %v964 = vunpack.c.h.b16 %v492
        %v965 = vunpack.c.l.b16 %v493
        %v966 = vunpack.c.h.b16 %v493
        %v967 = vunpack.c.l.b16 %v494
        %v968 = vunpack.c.h.b16 %v494
        %v969 = vunpack.c.l.b16 %v495
        %v970 = vunpack.c.h.b16 %v495
        %v971 = vunpack.c.l.b16 %v496
        %v972 = vunpack.c.h.b16 %v496
        %v973 = vunpack.c.l.b16 %v497
        %v974 = vunpack.c.h.b16 %v497
        %v975 = vunpack.c.l.b16 %v498
        %v976 = vunpack.c.h.b16 %v498
        %v977 = vunpack.c.l.b16 %v499
        %v978 = vunpack.c.h.b16 %v499
        %v979 = vunpack.c.l.b16 %v500
        %v980 = vunpack.c.h.b16 %v500
        %v981 = vunpack.c.l.b16 %v501
        %v982 = vunpack.c.h.b16 %v501
        %v983 = vunpack.c.l.b16 %v502
        %v984 = vunpack.c.h.b16 %v502
        %v985 = vunpack.c.l.b16 %v503
        %v986 = vunpack.c.h.b16 %v503
        %v987 = vunpack.c.l.b16 %v504
        %v988 = vunpack.c.h.b16 %v504
        %v989 = vunpack.c.l.b16 %v505
        %v990 = vunpack.c.h.b16 %v505
        %v991 = vunpack.c.l.b16 %v506
        %v992 = vunpack.c.h.b16 %v506
        %v993 = vunpack.c.l.b16 %v507
        %v994 = vunpack.c.h.b16 %v507
        %v995 = vunpack.c.l.b16 %v508
        %v996 = vunpack.c.h.b16 %v508
        %v997 = vunpack.c.l.b16 %v509
        %v998 = vunpack.c.h.b16 %v509
        %v999 = vunpack.c.l.b16 %v510
        %v1000 = vunpack.c.h.b16 %v510
        %v1001 = vunpack.c.l.b16 %v511
        %v1002 = vunpack.c.h.b16 %v511
        %v1003 = vunpack.c.l.b16 %v512
        %v1004 = vunpack.c.h.b16 %v512
        %v1005 = vunpack.c.l.b16 %v513
        %v1006 = vunpack.c.h.b16 %v513
        %v1007 = vunpack.c.l.b16 %v514
        %v1008 = vunpack.c.h.b16 %v514
        %v1009 = vunpack.c.l.b16 %v515
        %v1010 = vunpack.c.h.b16 %v515
        %v1011 = vunpack.c.l.b16 %v516
        %v1012 = vunpack.c.h.b16 %v516
        %v1013 = vunpack.c.l.b16 %v517
        %v1014 = vunpack.c.h.b16 %v517
        %v1015 = vunpack.c.l.b16 %v518
        %v1016 = vunpack.c.h.b16 %v518
        %v1017 = vunpack.c.l.b16 %v519
        %v1018 = vunpack.c.h.b16 %v519
        %v1019 = vunpack.c.l.b16 %v520
        %v1020 = vunpack.c.h.b16 %v520
        %v1021 = vunpack.c.l.b16 %v521
        %v1022 = vunpack.c.h.b16 %v521
        %v1023 = vunpack.c.l.b16 %v522
        %v1024 = vunpack.c.h.b16 %v522
        %v1025 = vunpack.c.l.b16 %v523
        %v1026 = vunpack.c.h.b16 %v523
        %v1027 = vunpack.c.l.b16 %v524
        %v1028 = vunpack.c.h.b16 %v524
        %v1029 = vunpack.c.l.b16 %v525
        %v1030 = vunpack.c.h.b16 %v525
        %v1031 = vunpack.c.l.b16 %v526
        %v1032 = vunpack.c.h.b16 %v526
        %v1033 = vunpack.c.l.b16 %v527
        %v1034 = vunpack.c.h.b16 %v527
        %v1035 = vunpack.c.l.b16 %v528
        %v1036 = vunpack.c.h.b16 %v528
        %v1037 = vunpack.c.l.b16 %v529
        %v1038 = vunpack.c.h.b16 %v529
        %v1039 = vunpack.c.l.b16 %v530
        %v1040 = vunpack.c.h.b16 %v530
        %v1041 = vunpack.c.l.b16 %v531
        %v1042 = vunpack.c.h.b16 %v531
        %v1043 = vunpack.c.l.b16 %v532
        %v1044 = vunpack.c.h.b16 %v532
        %v1045 = vunpack.c.l.b16 %v533
        %v1046 = vunpack.c.h.b16 %v533
        %v1047 = vunpack.c.l.b16 %v534
        %v1048 = vunpack.c.h.b16 %v534
        %v1049 = vpack.c.b16 %v955, %v953
        %v1050 = vpack.c.b16 %v956, %v954
        %v1051 = vpack.c.b16 %v959, %v957
        %v1052 = vpack.c.b16 %v960, %v958
        %v1053 = vpack.c.b16 %v963, %v961
        %v1054 = vpack.c.b16 %v964, %v962
        %v1055 = vpack.c.b16 %v967, %v965
        %v1056 = vpack.c.b16 %v968, %v966
        %v1057 = vpack.c.b16 %v971, %v969
        %v1058 = vpack.c.b16 %v972, %v970
        %v1059 = vpack.c.b16 %v975, %v973
        %v1060 = vpack.c.b16 %v976, %v974
        %v1061 = vpack.c.b16 %v979, %v977
        %v1062 = vpack.c.b16 %v980, %v978
        %v1063 = vpack.c.b16 %v983, %v981
        %v1064 = vpack.c.b16 %v984, %v982
        %v1065 = vpack.c.b16 %v987, %v985
        %v1066 = vpack.c.b16 %v988, %v986
        %v1067 = vpack.c.b16 %v991, %v989
        %v1068 = vpack.c.b16 %v992, %v990
        %v1069 = vpack.c.b16 %v995, %v993
        %v1070 = vpack.c.b16 %v996, %v994
        %v1071 = vpack.c.b16 %v999, %v997
        %v1072 = vpack.c.b16 %v1000, %v998
        %v1073 = vpack.c.b16 %v1003, %v1001
        %v1074 = vpack.c.b16 %v1004, %v1002
        %v1075 = vpack.c.b16 %v1007, %v1005
        %v1076 = vpack.c.b16 %v1008, %v1006
        %v1077 = vpack.c.b16 %v1011, %v1009
        %v1078 = vpack.c.b16 %v1012, %v1010
        %v1079 = vpack.c.b16 %v1015, %v1013
        %v1080 = vpack.c.b16 %v1016, %v1014
        %v1081 = vpack.c.b16 %v1019, %v1017
        %v1082 = vpack.c.b16 %v1020, %v1018
        %v1083 = vpack.c.b16 %v1023, %v1021
        %v1084 = vpack.c.b16 %v1024, %v1022
        %v1085 = vpack.c.b16 %v1027, %v1025
        %v1086 = vpack.c.b16 %v1028, %v1026
        %v1087 = vpack.c.b16 %v1031, %v1029
        %v1088 = vpack.c.b16 %v1032, %v1030
        %v1089 = vpack.c.b16 %v1035, %v1033
        %v1090 = vpack.c.b16 %v1036, %v1034
        %v1091 = vpack.c.b16 %v1039, %v1037
        %v1092 = vpack.c.b16 %v1040, %v1038
        %v1093 = vpack.c.b16 %v1043, %v1041
        %v1094 = vpack.c.b16 %v1044, %v1042
        %v1095 = vpack.c.b16 %v1047, %v1045
        %v1096 = vpack.c.b16 %v1048, %v1046
        %1145 = vmatprep.subr.bf16.mxu0 %v1064
        %1146 = vmatpush1.bf16.msra.mxu0 %v1063
        %1147 = vmatprep.subr.bf16.mxu0 %v1062
        %1148 = vmatpush1.bf16.msra.mxu0 %v1061
        %1149 = vmatprep.subr.bf16.mxu0 %v1060
        %1150 = vmatpush1.bf16.msra.mxu0 %v1059
        %1151 = vmatprep.subr.bf16.mxu0 %v1058
        %1152 = vmatpush1.bf16.msra.mxu0 %v1057
        %1153 = vmatprep.subr.bf16.mxu0 %v1056
        %1154 = vmatpush1.bf16.msra.mxu0 %v1055
        %1155 = vmatprep.subr.bf16.mxu0 %v1054
        %1156 = vmatpush1.bf16.msra.mxu0 %v1053
        %1157 = vmatprep.subr.bf16.mxu0 %v1052
        %1158 = vmatpush1.bf16.msra.mxu0 %v1051
        %1159 = vmatprep.subr.bf16.mxu0 %v1050
        %1160 = vmatpush1.bf16.msra.mxu0 %v1049
        %1161 = vmatprep.subr.bf16.mxu0 %v1080
        %1162 = vmatpush2.bf16.msra.mxu0 %v1079
        %1163 = vmatprep.subr.bf16.mxu0 %v1078
        %1164 = vmatpush2.bf16.msra.mxu0 %v1077
        %1165 = vmatprep.subr.bf16.mxu0 %v1076
        %1166 = vmatpush2.bf16.msra.mxu0 %v1075
        %1167 = vmatprep.subr.bf16.mxu0 %v1074
        %1168 = vmatpush2.bf16.msra.mxu0 %v1073
        %1169 = vmatprep.subr.bf16.mxu0 %v1072
        %1170 = vmatpush2.bf16.msra.mxu0 %v1071
        %1171 = vmatprep.subr.bf16.mxu0 %v1070
        %1172 = vmatpush2.bf16.msra.mxu0 %v1069
        %1173 = vmatprep.subr.bf16.mxu0 %v1068
        %1174 = vmatpush2.bf16.msra.mxu0 %v1067
        %1175 = vmatprep.subr.bf16.mxu0 %v1066
        %1176 = vmatpush2.bf16.msra.mxu0 %v1065
        %1177 = vmatprep.mubr.bf16.mxu0 %v485
        %1178 = vmatmul.mubr.bf16.gmra.mxu0 %v484
        %v1179 = vpop.f32.mrf.mxu0
        %v1180 = vadd.f32 %v899, %v1179
        %v1181 = vpop.f32.mrf.mxu0
        %v1182 = vadd.f32 %v901, %v1181
        %v1183 = vpop.f32.mrf.mxu0
        %v1184 = vpop.f32.mrf.mxu0
        %1185 = vdwg.mxu0
        %1186 = vmatprep.subr.bf16.mxu0 %v1096
        %1187 = vmatpush1.bf16.msra.mxu0 %v1095
        %1188 = vmatprep.subr.bf16.mxu0 %v1094
        %1189 = vmatpush1.bf16.msra.mxu0 %v1093
        %1190 = vmatprep.subr.bf16.mxu0 %v1092
        %1191 = vmatpush1.bf16.msra.mxu0 %v1091
        %1192 = vmatprep.subr.bf16.mxu0 %v1090
        %1193 = vmatpush1.bf16.msra.mxu0 %v1089
        %1194 = vmatprep.subr.bf16.mxu0 %v1088
        %1195 = vmatpush1.bf16.msra.mxu0 %v1087
        %1196 = vmatprep.subr.bf16.mxu0 %v1086
        %1197 = vmatpush1.bf16.msra.mxu0 %v1085
        %1198 = vmatprep.subr.bf16.mxu0 %v1084
        %1199 = vmatpush1.bf16.msra.mxu0 %v1083
        %1200 = vmatprep.subr.bf16.mxu0 %v1082
        %1201 = vmatpush1.bf16.msra.mxu0 %v1081
        %1202 = vmatprep.subr.bf16.mxu0 0
        %1203 = vmatpush2.bf16.msra.mxu0 0
        %1204 = vmatprep.subr.bf16.mxu0 0
        %1205 = vmatpush2.bf16.msra.mxu0 0
        %1206 = vmatprep.subr.bf16.mxu0 0
        %1207 = vmatpush2.bf16.msra.mxu0 0
        %1208 = vmatprep.subr.bf16.mxu0 0
        %1209 = vmatpush2.bf16.msra.mxu0 0
        %1210 = vmatprep.subr.bf16.mxu0 0
        %1211 = vmatpush2.bf16.msra.mxu0 0
        %1212 = vmatprep.subr.bf16.mxu0 0
        %1213 = vmatpush2.bf16.msra.mxu0 0
        %1214 = vmatprep.subr.bf16.mxu0 0
        %1215 = vmatpush2.bf16.msra.mxu0 0
        %1216 = vmatprep.subr.bf16.mxu0 0
        %1217 = vmatpush2.bf16.msra.mxu0 0
        %1218 = vmatprep.mubr.bf16.mxu0 0
        %1219 = vmatmul.mubr.bf16.gmra.mxu0 %v486
        %v1220 = vpop.f32.mrf.mxu0
        %v1221 = vadd.f32 %v1180, %v1220
        %v1222 = vpop.f32.mrf.mxu0
        %v1223 = vadd.f32 %v1182, %v1222
        %v1224 = vpop.f32.mrf.mxu0
        %v1225 = vpop.f32.mrf.mxu0
        %1226 = vdwg.mxu0
        %v1227 = vmax.f32 %v1221, %v1223
        %1228 = vrot.lane.b32.xlu0 %v1227, 64
        %v1229 = vpop.permute.xlu0 %1228
        %v1230 = vmax.f32 %v1227, %v1229
        %1231 = vrot.lane.b32.xlu0 %v1230, 32
        %v1232 = vpop.permute.xlu0 %1231
        %v1233 = vmax.f32 %v1230, %v1232
        %v1234 = vld [vmem:[%s4] sm:$0x1]
        %v1236 = vlaneseq
        %v1237 = vshrl.u32 %v1236, 7
        %v1238 = vsub.s32 0, %v1237
        %v1239 = vrot.slane %v1234, %v1238
        %v1241 = vadd.f32 %v1233, %v1239
        %v1242 = vmax.f32 %v1241, 0.0
        %v1243 = vld [vmem:[#allocation10] sm:$0xff]
        %v1244 = vld [vmem:[#allocation10 + $0x8] sm:$0xff]
        %v1245 = vld [vmem:[#allocation10 + $0x10] sm:$0xff]
        %v1246 = vld [vmem:[#allocation10 + $0x18] sm:$0xff]
        %v1247 = vld [vmem:[%s6] sm:$0x1]
        %v1249 = vlaneseq
        %v1250 = vshrl.u32 %v1249, 7
        %v1251 = vsub.s32 0, %v1250
        %v1252 = vrot.slane %v1247, %v1251
        %vm1254 = vcmask 261120
        %v1256 = vsel %vm1254, %v1242, 0
        %1258 = vmatprep.subr.mxu0 0.0
        %1259 = vmatpush1.msra.mxu0 0.0
        %1260 = vmatprep.subr.mxu0 0.0
        %1261 = vmatpush1.msra.mxu0 0.0
        %1262 = vmatprep.subr.mxu0 0.0
        %1263 = vmatpush1.msra.mxu0 0.0
        %1264 = vmatprep.subr.mxu0 0.0
        %1265 = vmatpush1.msra.mxu0 0.0
        %1266 = vmatprep.subr.mxu0 0.0
        %1267 = vmatpush1.msra.mxu0 0.0
        %1268 = vmatprep.subr.mxu0 0.0
        %1269 = vmatpush1.msra.mxu0 0.0
        %1270 = vmatprep.subr.mxu0 0.0
        %1271 = vmatpush1.msra.mxu0 0.0
        %1272 = vmatprep.subr.mxu0 0.0
        %1273 = vmatpush1.msra.mxu0 0.0
        %1274 = vmatprep.subr.mxu0 0.0
        %1275 = vmatpush1.msra.mxu0 0.0
        %1276 = vmatprep.subr.mxu0 0.0
        %1277 = vmatpush1.msra.mxu0 0.0
        %1278 = vmatprep.subr.mxu0 0.0
        %1279 = vmatpush1.msra.mxu0 0.0
        %1280 = vmatprep.subr.mxu0 0.0
        %1281 = vmatpush1.msra.mxu0 0.0
        %1282 = vmatprep.subr.mxu0 0.0
        %1283 = vmatpush1.msra.mxu0 %v1246
        %1284 = vmatprep.subr.mxu0 0.0
        %1285 = vmatpush1.msra.mxu0 %v1245
        %1286 = vmatprep.subr.mxu0 0.0
        %1287 = vmatpush1.msra.mxu0 %v1244
        %1288 = vmatprep.subr.mxu0 0.0
        %1289 = vmatpush1.msra.mxu0 %v1243
        %1290 = vmatprep.subr.mxu0 0.0
        %1291 = vmatpush2.msra.mxu0 0.0
        %1292 = vmatprep.subr.mxu0 0.0
        %1293 = vmatpush2.msra.mxu0 0.0
        %1294 = vmatprep.subr.mxu0 0.0
        %1295 = vmatpush2.msra.mxu0 0.0
        %1296 = vmatprep.subr.mxu0 0.0
        %1297 = vmatpush2.msra.mxu0 0.0
        %1298 = vmatprep.subr.mxu0 0.0
        %1299 = vmatpush2.msra.mxu0 0.0
        %1300 = vmatprep.subr.mxu0 0.0
        %1301 = vmatpush2.msra.mxu0 0.0
        %1302 = vmatprep.subr.mxu0 0.0
        %1303 = vmatpush2.msra.mxu0 0.0
        %1304 = vmatprep.subr.mxu0 0.0
        %1305 = vmatpush2.msra.mxu0 0.0
        %1306 = vmatprep.subr.mxu0 0.0
        %1307 = vmatpush2.msra.mxu0 0.0
        %1308 = vmatprep.subr.mxu0 0.0
        %1309 = vmatpush2.msra.mxu0 0.0
        %1310 = vmatprep.subr.mxu0 0.0
        %1311 = vmatpush2.msra.mxu0 0.0
        %1312 = vmatprep.subr.mxu0 0.0
        %1313 = vmatpush2.msra.mxu0 0.0
        %1314 = vmatprep.subr.mxu0 0.0
        %1315 = vmatpush2.msra.mxu0 0.0
        %1316 = vmatprep.subr.mxu0 0.0
        %1317 = vmatpush2.msra.mxu0 0.0
        %1318 = vmatprep.subr.mxu0 0.0
        %1319 = vmatpush2.msra.mxu0 0.0
        %1320 = vmatprep.subr.mxu0 0.0
        %1321 = vmatpush2.msra.mxu0 0.0
        %1322 = vmatprep.mubr.f32.mxu0 0.0
        %1323 = vmatmul.mubr.f32.gmra.mxu0 %v1256
        %v1324 = vpop.f32.mrf.mxu0
        %v1325 = vadd.f32 %v1252, %v1324
        %v1326 = vpop.f32.mrf.mxu0
        %1327 = vdwg.mxu0
        %v1328 = vmax.f32 %v1325, 0.0
        %v1329 = vxor.u32 %v1325, 2147483648
        %v1330 = vmul.f32 %v1329, 1.442695
        %v1331 = vpow.pop %v1330
        %v1332 = vadd.f32 %v1331, 1.0
        %v1333 = vrcp.pop %v1332
        %v1334 = vmul.f32 1.0, %v1333
        %v1335 = vsub.f32 %v1328, %v1242
        %1337 = vrot.lane.b32.xlu0 %v1335, 32
        %v1338 = vpop.permute.xlu0 %1337
        %v1340 = vmul.f32 %v1334, %v1338
        %1342 = vrot.lane.b32.xlu0 %v1340, 96
        %v1343 = vpop.permute.xlu0 %1342
        %v1345 = vadd.f32 %v1242, %v1343
        %1346 = vst.msk [vmem:[%s351] sm:$0xff] %vm1254, %v1345
        %s1347 = sand.u32 %s186, 1
        %s1348 = scalar_lea.sflag [#allocation4], %s1347
        %s1349 = sand.u32 %s186, 1
        %s1350 = smul.addr %s1349, 8
        %s1351 = scalar_lea.vmem [#allocation11], %s1350
        // Predicated region
        $region69: #{model_embeddings_forward.1} parent=47 // pred_check
          %p1352 = pneg %p196
        $region70: #{model_embeddings_forward.1} parent=47 // pred_check_branch
          %1354 = sbr.rel (%p1352) target = $region72
        $region71: #{model_embeddings_forward.1} parent=47 // pred_region
          %s1356 = ssub.s32 128, 128
          %1357 = vsyncadd %s1348, %s1356
          %s1358 = smul.addr %s26, 128
          %s1359 = scalar_lea.hbm %s7, %s1358
          %s1361 = sshll.u32 %s1351, 4
          %s1362 = int_to_ptr.vmem [resolvable:$true] %s1361
          %1364 = dma.vmem_to_hbm [thread:$0]  %s1362, 128, %s1359, %s1348
        $region72: #{model_embeddings_forward.1} parent=47 // pred_fallthru
          _
      $region48: #{model_embeddings_forward.1} parent=5 // pred_fallthru
        _
      %p1365 = scmp.le.s32.totalorder 2, %s21
      // Predicated region
      $region73: #{model_embeddings_forward.1} parent=5 // pred_check
        %p1366 = pneg %p1365
      $region74: #{model_embeddings_forward.1} parent=5 // pred_check_branch
        %1368 = sbr.rel (%p1366) target = $region76
      $region75: #{model_embeddings_forward.1} parent=5 // pred_region
        %s1369 = ssub.s32 %s21, 2
        // Predicated region
        $region77: #{model_embeddings_forward.1} parent=75 // pred_check
          %p1370 = pneg %p202
        $region78: #{model_embeddings_forward.1} parent=75 // pred_check_branch
          %1372 = sbr.rel (%p1370) target = $region80
        $region79: #{model_embeddings_forward.1} parent=75 // pred_region
          %s1373 = sand.u32 %s187, 1
          %s1374 = scalar_lea.sflag [#allocation4], %s1373
          %s1375 = sand.u32 %s187, 1
          %s1376 = smul.addr %s1375, 8
          %s1377 = scalar_lea.vmem [#allocation11], %s1376
          %1378 = dma.done %s1374, 128
        $region80: #{model_embeddings_forward.1} parent=75 // pred_fallthru
          _
      $region76: #{model_embeddings_forward.1} parent=5 // pred_fallthru
        _
    $region6: #{model_embeddings_forward.1} parent=1 // loop_footer
      %s25 = sadd.s32 1, %s21
    $region7: #{model_embeddings_forward.1} parent=1 // loop_footer_branch
      %20 = sbr.rel target = $region3
    $region8: #{model_embeddings_forward.1} parent=1 // loop_exit
      _
    %1379 = vsyncpa [#allocation3], 1
    %s1380 = scalar_lea.sflag [#allocation3], 1
    %1381 = vsyncpa %s1380, 1
    %1382 = vsyncpa [#allocation6], 1
    %1383 = vsyncpa [#allocation9], 1
    %1384 = vsyncpa [#allocation4], 1
    %s1385 = scalar_lea.sflag [#allocation4], 1
    %1386 = vsyncpa %s1385, 1

</llo_original>
